<compile_context>
chip_gen: v5e
topology: v5e:2x2
jax: 0.10.0
libtpu: 0.0.40
codegen_flags: <defaults>
</compile_context>

<pallas_src>
import functools

import jax
import jax.numpy as jnp
from jax.experimental import pallas as pl
from jax.experimental.pallas import tpu as pltpu


def _cdiv(a, b):
    return (a + b - 1) // b


def _round_up(x, m):
    return ((x + m - 1) // m) * m


def _clue_forward_kernel(*refs, approx_recip):
    """One batch tile of the fused CLUECL3 infer forward.

    refs layout (weights VMEM-resident, x tiles pipelined over batch):
      refs[0:3]          x_v      (tile, d_v)   original dtype
      refs[3+6v : 9+6v]  view v:  wa (d_v,d_v), ba (1,d_v), we (d_v,H),
                                  be (1,H),     wc (1,H),   wf (H,C)
      refs[-3]           bc       (1, 3) f32
      refs[-2]           bf       (1, C) f32
      refs[-1]           out      (tile, C)
    """
    x_refs = refs[:3]
    bc_ref, bf_ref, out_ref = refs[-3], refs[-2], refs[-1]

    acc = None
    for v in range(3):
        wa_ref, ba_ref, we_ref, be_ref, wc_ref, wf_ref = refs[3 + 6 * v: 9 + 6 * v]
        cd = wa_ref.dtype                         # MXU operand dtype

        x = x_refs[v][...].astype(jnp.float32)    # elementwise math stays f32

        # Attention gate: sigmoid(x @ Wa + ba). exp and the reciprocal both go
        # to the EUP slot (approx recip when the bf16 path is active).
        z = (jnp.dot(x.astype(cd), wa_ref[...],
                     preferred_element_type=jnp.float32) + ba_ref[...])
        att = pl.reciprocal(1.0 + jnp.exp(-z), approx=approx_recip)
        gated = (x * att).astype(cd)

        # Embedding: relu(gated @ We + be); dropout is identity at inference.
        h = jnp.maximum(
            jnp.dot(gated, we_ref[...], preferred_element_type=jnp.float32)
            + be_ref[...], 0.0)                    # (tile, H) f32

        # Confidence Linear(H -> 1) as VPU multiply + lane reduction
        # (no 1-lane-wide MXU matmul, no cross-view masking needed).
        conf = (jnp.sum(h * wc_ref[...], axis=-1, keepdims=True)
                + bc_ref[0:1, v:v + 1])            # (tile, 1) f32
        f = (h * conf).astype(cd)

        # Per-view slice of the MMClasifier weight; summing the three partial
        # dots == concat([f0,f1,f2]) @ Wf, with no lane-axis concatenate.
        part = jnp.dot(f, wf_ref[...], preferred_element_type=jnp.float32)
        acc = part if acc is None else acc + part

    out_ref[...] = (acc + bf_ref[...]).astype(out_ref.dtype)


def pack_params(params, hidden, compute_dtype):
    """Per-view weight tuples; MXU operands cast to compute_dtype, rest f32."""
    cd = compute_dtype
    h = hidden
    view_params = []
    for v in range(3):
        p = params[f"view{v}"]
        view_params.append((
            p["wa"].astype(cd),                              # (d_v, d_v)
            p["ba"].astype(jnp.float32),                     # (1, d_v)
            p["we"].astype(cd),                              # (d_v, H)
            p["be"].astype(jnp.float32),                     # (1, H)
            p["wc"].reshape(1, h).astype(jnp.float32),       # (1, H)
            params["wf"][v * h:(v + 1) * h, :].astype(cd),   # (H, C)
        ))
    bc = jnp.concatenate(
        [params[f"view{v}"]["bc"].reshape(1, 1) for v in range(3)], axis=1
    ).astype(jnp.float32)                                    # (1, 3)
    bf = params["bf"].astype(jnp.float32)                    # (1, C)
    return view_params, bc, bf


def cluecl3_infer(data_list, params, in_dims, hidden, num_class, *,
                  tile_n=1024, compute_dtype=jnp.bfloat16,
                  out_dtype=jnp.float32, approx_sigmoid=None,
                  min_grid=2, single_buffer_weights=None):
    """CLUECL3 forward(infer=True) as one batch-tiled fused Pallas kernel."""
    assert len(data_list) == 3 and len(in_dims) == 3
    h = hidden
    c = int(num_class)
    n = int(data_list[0].shape[0])
    cd = jnp.dtype(compute_dtype)
    if approx_sigmoid is None:
        approx_sigmoid = cd != jnp.dtype(jnp.float32)

    view_params, bc, bf = pack_params(params, hidden, cd)

    # --- batch tiling: sublane-aligned, balanced tiles (bounded zero-padding),
    # >= min_grid steps when possible so both v7x TensorCores get work.
    sub = 8
    for dt in [x.dtype for x in data_list] + [jnp.dtype(out_dtype)]:
        sub = max(sub, 32 // jnp.dtype(dt).itemsize)
    num_tiles = max(int(min_grid), _cdiv(n, int(tile_n)))
    tile = _round_up(max(_cdiv(n, num_tiles), 1), sub)
    num_tiles = _cdiv(n, tile)
    n_pad = num_tiles * tile

    xs = []
    for v in range(3):
        xv = data_list[v]
        if n_pad != n:  # bounded to < min_grid*sub rows by the balanced tiling
            xv = jnp.pad(xv, ((0, n_pad - n), (0, 0)))
        xs.append(xv)

    # --- VMEM budget / optional single-buffering of the resident weights ---
    isz = cd.itemsize
    w_bytes = sum(int(in_dims[v]) ** 2 * isz + int(in_dims[v]) * h * isz
                  + h * c * isz + (int(in_dims[v]) + 2 * h) * 4
                  for v in range(3)) + (3 + c) * 4
    if single_buffer_weights is None:
        # Constant-index_map inputs double-buffer by default; only bother
        # single-buffering once that wastes real VMEM (v7x: 64 MiB physical).
        single_buffer_weights = w_bytes >= (4 << 20)
    x_tile_bytes = tile * sum(int(in_dims[v]) * jnp.dtype(xs[v].dtype).itemsize
                              for v in range(3))
    out_tile_bytes = tile * c * jnp.dtype(out_dtype).itemsize
    interm_bytes = tile * (max(int(d) for d in in_dims) * 4 * 3 + 3 * h * 4 * 2)
    vmem_est = ((1 if single_buffer_weights else 2) * w_bytes
                + 2 * (x_tile_bytes + out_tile_bytes) + interm_bytes)
    vmem_limit = int(min(64 << 20, max(32 << 20, int(1.5 * vmem_est))))

    def _resident(shape):
        index_map = lambda i: (0,) * len(shape)
        if single_buffer_weights:
            return pl.BlockSpec(shape, index_map, pipeline_mode=pl.Buffered(1))
        return pl.BlockSpec(shape, index_map)

    in_specs, args = [], []
    for v in range(3):  # batch-pipelined activations, in their source dtype
        in_specs.append(pl.BlockSpec((tile, int(in_dims[v])), lambda i: (i, 0)))
        args.append(xs[v])
    for v in range(3):  # VMEM-resident per-view weights
        for arr in view_params[v]:
            in_specs.append(_resident(arr.shape))
            args.append(arr)
    for arr in (bc, bf):
        in_specs.append(_resident(arr.shape))
        args.append(arr)

    out_specs = pl.BlockSpec((tile, c), lambda i: (i, 0))

    d_sum = sum(int(d) for d in in_dims)
    flops = (2 * n_pad * sum(int(in_dims[v]) ** 2 + int(in_dims[v]) * h + h * c
                             for v in range(3))
             + 10 * n_pad * (d_sum + 3 * h))
    transcendentals = n_pad * d_sum
    bytes_accessed = (sum(int(x.size) * x.dtype.itemsize for x in xs)
                      + n_pad * c * jnp.dtype(out_dtype).itemsize + w_bytes)

    kernel = functools.partial(_clue_forward_kernel,
                               approx_recip=bool(approx_sigmoid))

    out = pl.pallas_call(
        kernel,
        out_shape=jax.ShapeDtypeStruct((n_pad, c), out_dtype),
        grid_spec=pltpu.PrefetchScalarGridSpec(
            num_scalar_prefetch=0,
            grid=(num_tiles,),
            in_specs=in_specs,
            out_specs=out_specs,
        ),
        compiler_params=pltpu.CompilerParams(
            dimension_semantics=("parallel",),
            vmem_limit_bytes=vmem_limit,
        ),
        cost_estimate=pl.CostEstimate(
            flops=int(flops),
            transcendentals=int(transcendentals),
            bytes_accessed=int(bytes_accessed),
        ),
    )(*args)

    # Rows only: columns are already exactly num_class wide (no padded-lane
    # slice, hence no post-kernel full-width copy).
    return out[:n]


def _init_linear(key, fan_in, fan_out):
    """PyTorch nn.Linear init; W stored pre-transposed as (in, out)."""
    kw, kb = jax.random.split(key)
    scale = 1.0 / jnp.sqrt(jnp.float32(fan_in))
    w = jax.random.uniform(kw, (fan_in, fan_out), jnp.float32, -scale, scale)
    b = jax.random.uniform(kb, (1, fan_out), jnp.float32, -scale, scale)
    return w, b


def make_params(key, in_dims, hidden, num_class):
    params = {}
    keys = jax.random.split(key, 3 * 3 + 1)
    k_iter = iter(keys)
    for v in range(3):
        wa, ba = _init_linear(next(k_iter), in_dims[v], in_dims[v])
        we, be = _init_linear(next(k_iter), in_dims[v], hidden)
        wc, bc = _init_linear(next(k_iter), hidden, 1)
        params[f"view{v}"] = dict(wa=wa, ba=ba, we=we, be=be, wc=wc, bc=bc)
    wf, bf = _init_linear(next(k_iter), 3 * hidden, num_class)
    params["wf"] = wf
    params["bf"] = bf
    return params


def reference_forward(data_list, params, compute_dtype=jnp.float32):
    """Pure-JAX reference mirroring the PyTorch forward(infer=True).

    For compute_dtype=f32 this is exactly the module's math; for bf16 it
    applies the same MXU-operand quantization the kernel uses (f32 accumulation
    and f32 elementwise math).
    """
    cd = compute_dtype
    feats = []
    for v in range(3):
        p = params[f"view{v}"]
        x = data_list[v].astype(jnp.float32)
        att = jax.nn.sigmoid(
            jnp.dot(x.astype(cd), p["wa"].astype(cd),
                    preferred_element_type=jnp.float32) + p["ba"])
        gated = (x * att).astype(cd)
        h = jax.nn.relu(
            jnp.dot(gated, p["we"].astype(cd),
                    preferred_element_type=jnp.float32) + p["be"])
        conf = jnp.sum(h * p["wc"].reshape(1, -1), axis=-1, keepdims=True) + p["bc"]
        feats.append((h * conf).astype(cd))
    mm = jnp.concatenate(feats, axis=1)
    return (jnp.dot(mm, params["wf"].astype(cd),
                    preferred_element_type=jnp.float32) + params["bf"])


if __name__ == "__main__":
    # Small synthetic config consistent with the module:
    #   in_dim = [16, 24, 32], hidden_dim = [32], num_class = 4, batch = 8
    in_dims = (16, 24, 32)
    hidden = 32
    num_class = 4
    batch = 8

    key = jax.random.PRNGKey(0)
    kx0, kx1, kx2, kp = jax.random.split(key, 4)
    x0 = jax.random.normal(kx0, (batch, in_dims[0]), jnp.float32)
    x1 = jax.random.normal(kx1, (batch, in_dims[1]), jnp.float32)
    x2 = jax.random.normal(kx2, (batch, in_dims[2]), jnp.float32)
    params = make_params(kp, in_dims, hidden, num_class)
    data = [x0, x1, x2]

    # Exact f32 path -- faithful to the PyTorch eval forward.
    logits = cluecl3_infer(data, params, in_dims, hidden, num_class,
                           compute_dtype=jnp.float32)
    logits = jax.block_until_ready(logits)
    ref = reference_forward(data, params, compute_dtype=jnp.float32)
    assert logits.shape == (batch, num_class)
    assert jnp.allclose(logits, ref, atol=2e-4, rtol=2e-4), float(
        jnp.max(jnp.abs(logits - ref)))

    # Default path: bf16 MXU operands (f32 accumulation / f32 elementwise,
    # EUP approx reciprocal in the sigmoid), compared against an
    # identically-quantized pure-JAX reference.
    logits_bf16 = cluecl3_infer(data, params, in_dims, hidden, num_class)
    logits_bf16 = jax.block_until_ready(logits_bf16)
    ref_bf16 = reference_forward(data, params, compute_dtype=jnp.bfloat16)
    assert logits_bf16.shape == (batch, num_class)
    assert jnp.allclose(logits_bf16, ref_bf16, atol=2e-2, rtol=2e-2), float(
        jnp.max(jnp.abs(logits_bf16 - ref_bf16)))

    print("KERNEL_OK")
</pallas_src>

<mosaic_0001>
module attributes {stable_mosaic.version = 11 : i64} {
  func.func @_clue_forward_kernel(%arg0: i32, %arg1: memref<8x16xf32, #tpu.memory_space<vmem>>, %arg2: memref<8x24xf32, #tpu.memory_space<vmem>>, %arg3: memref<8x32xf32, #tpu.memory_space<vmem>>, %arg4: memref<16x16xf32, #tpu.memory_space<vmem>>, %arg5: memref<1x16xf32, #tpu.memory_space<vmem>>, %arg6: memref<16x32xf32, #tpu.memory_space<vmem>>, %arg7: memref<1x32xf32, #tpu.memory_space<vmem>>, %arg8: memref<1x32xf32, #tpu.memory_space<vmem>>, %arg9: memref<32x4xf32, #tpu.memory_space<vmem>>, %arg10: memref<24x24xf32, #tpu.memory_space<vmem>>, %arg11: memref<1x24xf32, #tpu.memory_space<vmem>>, %arg12: memref<24x32xf32, #tpu.memory_space<vmem>>, %arg13: memref<1x32xf32, #tpu.memory_space<vmem>>, %arg14: memref<1x32xf32, #tpu.memory_space<vmem>>, %arg15: memref<32x4xf32, #tpu.memory_space<vmem>>, %arg16: memref<32x32xf32, #tpu.memory_space<vmem>>, %arg17: memref<1x32xf32, #tpu.memory_space<vmem>>, %arg18: memref<32x32xf32, #tpu.memory_space<vmem>>, %arg19: memref<1x32xf32, #tpu.memory_space<vmem>>, %arg20: memref<1x32xf32, #tpu.memory_space<vmem>>, %arg21: memref<32x4xf32, #tpu.memory_space<vmem>>, %arg22: memref<1x3xf32, #tpu.memory_space<vmem>>, %arg23: memref<1x4xf32, #tpu.memory_space<vmem>>, %arg24: memref<8x4xf32, #tpu.memory_space<vmem>>) attributes {dimension_semantics = [#tpu.dimension_semantics<parallel>], iteration_bounds = array<i64: 1>, scalar_prefetch = 0 : i64, scratch_operands = 0 : i64, tpu.core_type = #tpu.core_type<tc>, window_params = [{transform_indices = @transform_0, window_bounds = array<i64: 8, 16>}, {transform_indices = @transform_1, window_bounds = array<i64: 8, 24>}, {transform_indices = @transform_2, window_bounds = array<i64: 8, 32>}, {pipeline_mode = #tpu.pipeline_mode<synchronous>, transform_indices = @transform_3, window_bounds = array<i64: 16, 16>}, {pipeline_mode = #tpu.pipeline_mode<synchronous>, transform_indices = @transform_4, window_bounds = array<i64: 1, 16>}, {pipeline_mode = #tpu.pipeline_mode<synchronous>, transform_indices = @transform_5, window_bounds = array<i64: 16, 32>}, {pipeline_mode = #tpu.pipeline_mode<synchronous>, transform_indices = @transform_6, window_bounds = array<i64: 1, 32>}, {pipeline_mode = #tpu.pipeline_mode<synchronous>, transform_indices = @transform_7, window_bounds = array<i64: 1, 32>}, {pipeline_mode = #tpu.pipeline_mode<synchronous>, transform_indices = @transform_8, window_bounds = array<i64: 32, 4>}, {pipeline_mode = #tpu.pipeline_mode<synchronous>, transform_indices = @transform_9, window_bounds = array<i64: 24, 24>}, {pipeline_mode = #tpu.pipeline_mode<synchronous>, transform_indices = @transform_10, window_bounds = array<i64: 1, 24>}, {pipeline_mode = #tpu.pipeline_mode<synchronous>, transform_indices = @transform_11, window_bounds = array<i64: 24, 32>}, {pipeline_mode = #tpu.pipeline_mode<synchronous>, transform_indices = @transform_12, window_bounds = array<i64: 1, 32>}, {pipeline_mode = #tpu.pipeline_mode<synchronous>, transform_indices = @transform_13, window_bounds = array<i64: 1, 32>}, {pipeline_mode = #tpu.pipeline_mode<synchronous>, transform_indices = @transform_14, window_bounds = array<i64: 32, 4>}, {pipeline_mode = #tpu.pipeline_mode<synchronous>, transform_indices = @transform_15, window_bounds = array<i64: 32, 32>}, {pipeline_mode = #tpu.pipeline_mode<synchronous>, transform_indices = @transform_16, window_bounds = array<i64: 1, 32>}, {pipeline_mode = #tpu.pipeline_mode<synchronous>, transform_indices = @transform_17, window_bounds = array<i64: 32, 32>}, {pipeline_mode = #tpu.pipeline_mode<synchronous>, transform_indices = @transform_18, window_bounds = array<i64: 1, 32>}, {pipeline_mode = #tpu.pipeline_mode<synchronous>, transform_indices = @transform_19, window_bounds = array<i64: 1, 32>}, {pipeline_mode = #tpu.pipeline_mode<synchronous>, transform_indices = @transform_20, window_bounds = array<i64: 32, 4>}, {pipeline_mode = #tpu.pipeline_mode<synchronous>, transform_indices = @transform_21, window_bounds = array<i64: 1, 3>}, {pipeline_mode = #tpu.pipeline_mode<synchronous>, transform_indices = @transform_22, window_bounds = array<i64: 1, 4>}, {transform_indices = @transform_23, window_bounds = array<i64: 8, 4>}]} {
    %c0 = arith.constant 0 : index
    %c0_0 = arith.constant 0 : index
    %0 = vector.load %arg1[%c0, %c0_0] : memref<8x16xf32, #tpu.memory_space<vmem>>, vector<8x16xf32>
    %c0_1 = arith.constant 0 : index
    %c0_2 = arith.constant 0 : index
    %1 = vector.load %arg4[%c0_1, %c0_2] : memref<16x16xf32, #tpu.memory_space<vmem>>, vector<16x16xf32>
    %cst = arith.constant dense<0.000000e+00> : vector<8x16xf32>
    %2 = tpu.matmul %0, %1, %cst {dimension_numbers = #tpu.dot_dimension_numbers<[1], [0], [0], [1], [0, 0, 1, 1], [], []>} : vector<8x16xf32>, vector<16x16xf32>, vector<8x16xf32> -> vector<8x16xf32>
    %c0_3 = arith.constant 0 : index
    %c0_4 = arith.constant 0 : index
    %3 = vector.load %arg5[%c0_3, %c0_4] : memref<1x16xf32, #tpu.memory_space<vmem>>, vector<1x16xf32>
    %4 = vector.broadcast %3 : vector<1x16xf32> to vector<8x16xf32>
    %5 = arith.addf %2, %4 : vector<8x16xf32>
    %cst_5 = arith.constant 0.000000e+00 : f32
    %6 = vector.broadcast %cst_5 : f32 to vector<8x16xf32>
    %7 = arith.subf %6, %5 : vector<8x16xf32>
    %8 = math.exp %7 : vector<8x16xf32>
    %cst_6 = arith.constant 1.000000e+00 : f32
    %9 = vector.broadcast %cst_6 : f32 to vector<8x16xf32>
    %10 = arith.addf %9, %8 : vector<8x16xf32>
    %11 = tpu.reciprocal %10 : vector<8x16xf32> -> vector<8x16xf32>
    %12 = arith.mulf %0, %11 : vector<8x16xf32>
    %c0_7 = arith.constant 0 : index
    %c0_8 = arith.constant 0 : index
    %13 = vector.load %arg6[%c0_7, %c0_8] : memref<16x32xf32, #tpu.memory_space<vmem>>, vector<16x32xf32>
    %cst_9 = arith.constant dense<0.000000e+00> : vector<8x32xf32>
    %14 = tpu.matmul %12, %13, %cst_9 {dimension_numbers = #tpu.dot_dimension_numbers<[1], [0], [0], [1], [0, 0, 1, 1], [], []>} : vector<8x16xf32>, vector<16x32xf32>, vector<8x32xf32> -> vector<8x32xf32>
    %c0_10 = arith.constant 0 : index
    %c0_11 = arith.constant 0 : index
    %15 = vector.load %arg7[%c0_10, %c0_11] : memref<1x32xf32, #tpu.memory_space<vmem>>, vector<1x32xf32>
    %16 = vector.broadcast %15 : vector<1x32xf32> to vector<8x32xf32>
    %17 = arith.addf %14, %16 : vector<8x32xf32>
    %cst_12 = arith.constant 0.000000e+00 : f32
    %18 = vector.broadcast %cst_12 : f32 to vector<8x32xf32>
    %19 = arith.maximumf %17, %18 : vector<8x32xf32>
    %c0_13 = arith.constant 0 : index
    %c0_14 = arith.constant 0 : index
    %20 = vector.load %arg8[%c0_13, %c0_14] : memref<1x32xf32, #tpu.memory_space<vmem>>, vector<1x32xf32>
    %21 = vector.broadcast %20 : vector<1x32xf32> to vector<8x32xf32>
    %22 = arith.mulf %19, %21 : vector<8x32xf32>
    %cst_15 = arith.constant dense<0.000000e+00> : vector<8xf32>
    %23 = vector.multi_reduction <add>, %22, %cst_15 [1] : vector<8x32xf32> to vector<8xf32>
    %24 = vector.shape_cast %23 : vector<8xf32> to vector<8x1xf32>
    %c0_16 = arith.constant 0 : index
    %c0_17 = arith.constant 0 : index
    %25 = vector.load %arg22[%c0_16, %c0_17] : memref<1x3xf32, #tpu.memory_space<vmem>>, vector<1x1xf32>
    %26 = vector.broadcast %25 : vector<1x1xf32> to vector<8x1xf32>
    %27 = arith.addf %24, %26 : vector<8x1xf32>
    %28 = vector.broadcast %27 : vector<8x1xf32> to vector<8x32xf32>
    %29 = arith.mulf %19, %28 : vector<8x32xf32>
    %c0_18 = arith.constant 0 : index
    %c0_19 = arith.constant 0 : index
    %30 = vector.load %arg9[%c0_18, %c0_19] : memref<32x4xf32, #tpu.memory_space<vmem>>, vector<32x4xf32>
    %cst_20 = arith.constant dense<0.000000e+00> : vector<8x4xf32>
    %31 = tpu.matmul %29, %30, %cst_20 {dimension_numbers = #tpu.dot_dimension_numbers<[1], [0], [0], [1], [0, 0, 1, 1], [], []>} : vector<8x32xf32>, vector<32x4xf32>, vector<8x4xf32> -> vector<8x4xf32>
    %c0_21 = arith.constant 0 : index
    %c0_22 = arith.constant 0 : index
    %32 = vector.load %arg2[%c0_21, %c0_22] : memref<8x24xf32, #tpu.memory_space<vmem>>, vector<8x24xf32>
    %c0_23 = arith.constant 0 : index
    %c0_24 = arith.constant 0 : index
    %33 = vector.load %arg10[%c0_23, %c0_24] : memref<24x24xf32, #tpu.memory_space<vmem>>, vector<24x24xf32>
    %cst_25 = arith.constant dense<0.000000e+00> : vector<8x24xf32>
    %34 = tpu.matmul %32, %33, %cst_25 {dimension_numbers = #tpu.dot_dimension_numbers<[1], [0], [0], [1], [0, 0, 1, 1], [], []>} : vector<8x24xf32>, vector<24x24xf32>, vector<8x24xf32> -> vector<8x24xf32>
    %c0_26 = arith.constant 0 : index
    %c0_27 = arith.constant 0 : index
    %35 = vector.load %arg11[%c0_26, %c0_27] : memref<1x24xf32, #tpu.memory_space<vmem>>, vector<1x24xf32>
    %36 = vector.broadcast %35 : vector<1x24xf32> to vector<8x24xf32>
    %37 = arith.addf %34, %36 : vector<8x24xf32>
    %cst_28 = arith.constant 0.000000e+00 : f32
    %38 = vector.broadcast %cst_28 : f32 to vector<8x24xf32>
    %39 = arith.subf %38, %37 : vector<8x24xf32>
    %40 = math.exp %39 : vector<8x24xf32>
    %cst_29 = arith.constant 1.000000e+00 : f32
    %41 = vector.broadcast %cst_29 : f32 to vector<8x24xf32>
    %42 = arith.addf %41, %40 : vector<8x24xf32>
    %43 = tpu.reciprocal %42 : vector<8x24xf32> -> vector<8x24xf32>
    %44 = arith.mulf %32, %43 : vector<8x24xf32>
    %c0_30 = arith.constant 0 : index
    %c0_31 = arith.constant 0 : index
    %45 = vector.load %arg12[%c0_30, %c0_31] : memref<24x32xf32, #tpu.memory_space<vmem>>, vector<24x32xf32>
    %cst_32 = arith.constant dense<0.000000e+00> : vector<8x32xf32>
    %46 = tpu.matmul %44, %45, %cst_32 {dimension_numbers = #tpu.dot_dimension_numbers<[1], [0], [0], [1], [0, 0, 1, 1], [], []>} : vector<8x24xf32>, vector<24x32xf32>, vector<8x32xf32> -> vector<8x32xf32>
    %c0_33 = arith.constant 0 : index
    %c0_34 = arith.constant 0 : index
    %47 = vector.load %arg13[%c0_33, %c0_34] : memref<1x32xf32, #tpu.memory_space<vmem>>, vector<1x32xf32>
    %48 = vector.broadcast %47 : vector<1x32xf32> to vector<8x32xf32>
    %49 = arith.addf %46, %48 : vector<8x32xf32>
    %cst_35 = arith.constant 0.000000e+00 : f32
    %50 = vector.broadcast %cst_35 : f32 to vector<8x32xf32>
    %51 = arith.maximumf %49, %50 : vector<8x32xf32>
    %c0_36 = arith.constant 0 : index
    %c0_37 = arith.constant 0 : index
    %52 = vector.load %arg14[%c0_36, %c0_37] : memref<1x32xf32, #tpu.memory_space<vmem>>, vector<1x32xf32>
    %53 = vector.broadcast %52 : vector<1x32xf32> to vector<8x32xf32>
    %54 = arith.mulf %51, %53 : vector<8x32xf32>
    %cst_38 = arith.constant dense<0.000000e+00> : vector<8xf32>
    %55 = vector.multi_reduction <add>, %54, %cst_38 [1] : vector<8x32xf32> to vector<8xf32>
    %56 = vector.shape_cast %55 : vector<8xf32> to vector<8x1xf32>
    %c0_39 = arith.constant 0 : index
    %c1 = arith.constant 1 : index
    %57 = vector.load %arg22[%c0_39, %c1] : memref<1x3xf32, #tpu.memory_space<vmem>>, vector<1x1xf32>
    %58 = vector.broadcast %57 : vector<1x1xf32> to vector<8x1xf32>
    %59 = arith.addf %56, %58 : vector<8x1xf32>
    %60 = vector.broadcast %59 : vector<8x1xf32> to vector<8x32xf32>
    %61 = arith.mulf %51, %60 : vector<8x32xf32>
    %c0_40 = arith.constant 0 : index
    %c0_41 = arith.constant 0 : index
    %62 = vector.load %arg15[%c0_40, %c0_41] : memref<32x4xf32, #tpu.memory_space<vmem>>, vector<32x4xf32>
    %cst_42 = arith.constant dense<0.000000e+00> : vector<8x4xf32>
    %63 = tpu.matmul %61, %62, %cst_42 {dimension_numbers = #tpu.dot_dimension_numbers<[1], [0], [0], [1], [0, 0, 1, 1], [], []>} : vector<8x32xf32>, vector<32x4xf32>, vector<8x4xf32> -> vector<8x4xf32>
    %64 = arith.addf %31, %63 : vector<8x4xf32>
    %c0_43 = arith.constant 0 : index
    %c0_44 = arith.constant 0 : index
    %65 = vector.load %arg3[%c0_43, %c0_44] : memref<8x32xf32, #tpu.memory_space<vmem>>, vector<8x32xf32>
    %c0_45 = arith.constant 0 : index
    %c0_46 = arith.constant 0 : index
    %66 = vector.load %arg16[%c0_45, %c0_46] : memref<32x32xf32, #tpu.memory_space<vmem>>, vector<32x32xf32>
    %cst_47 = arith.constant dense<0.000000e+00> : vector<8x32xf32>
    %67 = tpu.matmul %65, %66, %cst_47 {dimension_numbers = #tpu.dot_dimension_numbers<[1], [0], [0], [1], [0, 0, 1, 1], [], []>} : vector<8x32xf32>, vector<32x32xf32>, vector<8x32xf32> -> vector<8x32xf32>
    %c0_48 = arith.constant 0 : index
    %c0_49 = arith.constant 0 : index
    %68 = vector.load %arg17[%c0_48, %c0_49] : memref<1x32xf32, #tpu.memory_space<vmem>>, vector<1x32xf32>
    %69 = vector.broadcast %68 : vector<1x32xf32> to vector<8x32xf32>
    %70 = arith.addf %67, %69 : vector<8x32xf32>
    %cst_50 = arith.constant 0.000000e+00 : f32
    %71 = vector.broadcast %cst_50 : f32 to vector<8x32xf32>
    %72 = arith.subf %71, %70 : vector<8x32xf32>
    %73 = math.exp %72 : vector<8x32xf32>
    %cst_51 = arith.constant 1.000000e+00 : f32
    %74 = vector.broadcast %cst_51 : f32 to vector<8x32xf32>
    %75 = arith.addf %74, %73 : vector<8x32xf32>
    %76 = tpu.reciprocal %75 : vector<8x32xf32> -> vector<8x32xf32>
    %77 = arith.mulf %65, %76 : vector<8x32xf32>
    %c0_52 = arith.constant 0 : index
    %c0_53 = arith.constant 0 : index
    %78 = vector.load %arg18[%c0_52, %c0_53] : memref<32x32xf32, #tpu.memory_space<vmem>>, vector<32x32xf32>
    %cst_54 = arith.constant dense<0.000000e+00> : vector<8x32xf32>
    %79 = tpu.matmul %77, %78, %cst_54 {dimension_numbers = #tpu.dot_dimension_numbers<[1], [0], [0], [1], [0, 0, 1, 1], [], []>} : vector<8x32xf32>, vector<32x32xf32>, vector<8x32xf32> -> vector<8x32xf32>
    %c0_55 = arith.constant 0 : index
    %c0_56 = arith.constant 0 : index
    %80 = vector.load %arg19[%c0_55, %c0_56] : memref<1x32xf32, #tpu.memory_space<vmem>>, vector<1x32xf32>
    %81 = vector.broadcast %80 : vector<1x32xf32> to vector<8x32xf32>
    %82 = arith.addf %79, %81 : vector<8x32xf32>
    %cst_57 = arith.constant 0.000000e+00 : f32
    %83 = vector.broadcast %cst_57 : f32 to vector<8x32xf32>
    %84 = arith.maximumf %82, %83 : vector<8x32xf32>
    %c0_58 = arith.constant 0 : index
    %c0_59 = arith.constant 0 : index
    %85 = vector.load %arg20[%c0_58, %c0_59] : memref<1x32xf32, #tpu.memory_space<vmem>>, vector<1x32xf32>
    %86 = vector.broadcast %85 : vector<1x32xf32> to vector<8x32xf32>
    %87 = arith.mulf %84, %86 : vector<8x32xf32>
    %cst_60 = arith.constant dense<0.000000e+00> : vector<8xf32>
    %88 = vector.multi_reduction <add>, %87, %cst_60 [1] : vector<8x32xf32> to vector<8xf32>
    %89 = vector.shape_cast %88 : vector<8xf32> to vector<8x1xf32>
    %c0_61 = arith.constant 0 : index
    %c2 = arith.constant 2 : index
    %90 = vector.load %arg22[%c0_61, %c2] : memref<1x3xf32, #tpu.memory_space<vmem>>, vector<1x1xf32>
    %91 = vector.broadcast %90 : vector<1x1xf32> to vector<8x1xf32>
    %92 = arith.addf %89, %91 : vector<8x1xf32>
    %93 = vector.broadcast %92 : vector<8x1xf32> to vector<8x32xf32>
    %94 = arith.mulf %84, %93 : vector<8x32xf32>
    %c0_62 = arith.constant 0 : index
    %c0_63 = arith.constant 0 : index
    %95 = vector.load %arg21[%c0_62, %c0_63] : memref<32x4xf32, #tpu.memory_space<vmem>>, vector<32x4xf32>
    %cst_64 = arith.constant dense<0.000000e+00> : vector<8x4xf32>
    %96 = tpu.matmul %94, %95, %cst_64 {dimension_numbers = #tpu.dot_dimension_numbers<[1], [0], [0], [1], [0, 0, 1, 1], [], []>} : vector<8x32xf32>, vector<32x4xf32>, vector<8x4xf32> -> vector<8x4xf32>
    %97 = arith.addf %64, %96 : vector<8x4xf32>
    %c0_65 = arith.constant 0 : index
    %c0_66 = arith.constant 0 : index
    %98 = vector.load %arg23[%c0_65, %c0_66] : memref<1x4xf32, #tpu.memory_space<vmem>>, vector<1x4xf32>
    %99 = vector.broadcast %98 : vector<1x4xf32> to vector<8x4xf32>
    %100 = arith.addf %97, %99 : vector<8x4xf32>
    %c0_67 = arith.constant 0 : index
    %c0_68 = arith.constant 0 : index
    %101 = vector.load %arg24[%c0_67, %c0_68] : memref<8x4xf32, #tpu.memory_space<vmem>>, vector<8x4xf32>
    tpu.vector_store %arg24[%c0_67, %c0_68], %100 {strides = array<i32>} : memref<8x4xf32, #tpu.memory_space<vmem>>, vector<8x4xf32>,
    return
  }
  func.func @transform_0(%arg0: i32) -> (i32, i32) {
    %c0_i32 = arith.constant 0 : i32
    %c0_i32_0 = arith.constant 0 : i32
    return %arg0, %c0_i32 : i32, i32
  }
  func.func @transform_1(%arg0: i32) -> (i32, i32) {
    %c0_i32 = arith.constant 0 : i32
    %c0_i32_0 = arith.constant 0 : i32
    return %arg0, %c0_i32 : i32, i32
  }
  func.func @transform_2(%arg0: i32) -> (i32, i32) {
    %c0_i32 = arith.constant 0 : i32
    %c0_i32_0 = arith.constant 0 : i32
    return %arg0, %c0_i32 : i32, i32
  }
  func.func @transform_3(%arg0: i32) -> (i32, i32) {
    %c0_i32 = arith.constant 0 : i32
    %c0_i32_0 = arith.constant 0 : i32
    %c0_i32_1 = arith.constant 0 : i32
    return %c0_i32, %c0_i32_0 : i32, i32
  }
  func.func @transform_4(%arg0: i32) -> (i32, i32) {
    %c0_i32 = arith.constant 0 : i32
    %c0_i32_0 = arith.constant 0 : i32
    %c0_i32_1 = arith.constant 0 : i32
    return %c0_i32, %c0_i32_0 : i32, i32
  }
  func.func @transform_5(%arg0: i32) -> (i32, i32) {
    %c0_i32 = arith.constant 0 : i32
    %c0_i32_0 = arith.constant 0 : i32
    %c0_i32_1 = arith.constant 0 : i32
    return %c0_i32, %c0_i32_0 : i32, i32
  }
  func.func @transform_6(%arg0: i32) -> (i32, i32) {
    %c0_i32 = arith.constant 0 : i32
    %c0_i32_0 = arith.constant 0 : i32
    %c0_i32_1 = arith.constant 0 : i32
    return %c0_i32, %c0_i32_0 : i32, i32
  }
  func.func @transform_7(%arg0: i32) -> (i32, i32) {
    %c0_i32 = arith.constant 0 : i32
    %c0_i32_0 = arith.constant 0 : i32
    %c0_i32_1 = arith.constant 0 : i32
    return %c0_i32, %c0_i32_0 : i32, i32
  }
  func.func @transform_8(%arg0: i32) -> (i32, i32) {
    %c0_i32 = arith.constant 0 : i32
    %c0_i32_0 = arith.constant 0 : i32
    %c0_i32_1 = arith.constant 0 : i32
    return %c0_i32, %c0_i32_0 : i32, i32
  }
  func.func @transform_9(%arg0: i32) -> (i32, i32) {
    %c0_i32 = arith.constant 0 : i32
    %c0_i32_0 = arith.constant 0 : i32
    %c0_i32_1 = arith.constant 0 : i32
    return %c0_i32, %c0_i32_0 : i32, i32
  }
  func.func @transform_10(%arg0: i32) -> (i32, i32) {
    %c0_i32 = arith.constant 0 : i32
    %c0_i32_0 = arith.constant 0 : i32
    %c0_i32_1 = arith.constant 0 : i32
    return %c0_i32, %c0_i32_0 : i32, i32
  }
  func.func @transform_11(%arg0: i32) -> (i32, i32) {
    %c0_i32 = arith.constant 0 : i32
    %c0_i32_0 = arith.constant 0 : i32
    %c0_i32_1 = arith.constant 0 : i32
    return %c0_i32, %c0_i32_0 : i32, i32
  }
  func.func @transform_12(%arg0: i32) -> (i32, i32) {
    %c0_i32 = arith.constant 0 : i32
    %c0_i32_0 = arith.constant 0 : i32
    %c0_i32_1 = arith.constant 0 : i32
    return %c0_i32, %c0_i32_0 : i32, i32
  }
  func.func @transform_13(%arg0: i32) -> (i32, i32) {
    %c0_i32 = arith.constant 0 : i32
    %c0_i32_0 = arith.constant 0 : i32
    %c0_i32_1 = arith.constant 0 : i32
    return %c0_i32, %c0_i32_0 : i32, i32
  }
  func.func @transform_14(%arg0: i32) -> (i32, i32) {
    %c0_i32 = arith.constant 0 : i32
    %c0_i32_0 = arith.constant 0 : i32
    %c0_i32_1 = arith.constant 0 : i32
    return %c0_i32, %c0_i32_0 : i32, i32
  }
  func.func @transform_15(%arg0: i32) -> (i32, i32) {
    %c0_i32 = arith.constant 0 : i32
    %c0_i32_0 = arith.constant 0 : i32
    %c0_i32_1 = arith.constant 0 : i32
    return %c0_i32, %c0_i32_0 : i32, i32
  }
  func.func @transform_16(%arg0: i32) -> (i32, i32) {
    %c0_i32 = arith.constant 0 : i32
    %c0_i32_0 = arith.constant 0 : i32
    %c0_i32_1 = arith.constant 0 : i32
    return %c0_i32, %c0_i32_0 : i32, i32
  }
  func.func @transform_17(%arg0: i32) -> (i32, i32) {
    %c0_i32 = arith.constant 0 : i32
    %c0_i32_0 = arith.constant 0 : i32
    %c0_i32_1 = arith.constant 0 : i32
    return %c0_i32, %c0_i32_0 : i32, i32
  }
  func.func @transform_18(%arg0: i32) -> (i32, i32) {
    %c0_i32 = arith.constant 0 : i32
    %c0_i32_0 = arith.constant 0 : i32
    %c0_i32_1 = arith.constant 0 : i32
    return %c0_i32, %c0_i32_0 : i32, i32
  }
  func.func @transform_19(%arg0: i32) -> (i32, i32) {
    %c0_i32 = arith.constant 0 : i32
    %c0_i32_0 = arith.constant 0 : i32
    %c0_i32_1 = arith.constant 0 : i32
    return %c0_i32, %c0_i32_0 : i32, i32
  }
  func.func @transform_20(%arg0: i32) -> (i32, i32) {
    %c0_i32 = arith.constant 0 : i32
    %c0_i32_0 = arith.constant 0 : i32
    %c0_i32_1 = arith.constant 0 : i32
    return %c0_i32, %c0_i32_0 : i32, i32
  }
  func.func @transform_21(%arg0: i32) -> (i32, i32) {
    %c0_i32 = arith.constant 0 : i32
    %c0_i32_0 = arith.constant 0 : i32
    %c0_i32_1 = arith.constant 0 : i32
    return %c0_i32, %c0_i32_0 : i32, i32
  }
  func.func @transform_22(%arg0: i32) -> (i32, i32) {
    %c0_i32 = arith.constant 0 : i32
    %c0_i32_0 = arith.constant 0 : i32
    %c0_i32_1 = arith.constant 0 : i32
    return %c0_i32, %c0_i32_0 : i32, i32
  }
  func.func @transform_23(%arg0: i32) -> (i32, i32) {
    %c0_i32 = arith.constant 0 : i32
    %c0_i32_0 = arith.constant 0 : i32
    return %arg0, %c0_i32 : i32, i32
  }
}

</mosaic_0001>

<llo_original>
// kernel: tpu_custom_call.1
$region0: #{tpu_custom_call.1}
  #allocation0 [shape = 'u32[]', space=smem, size = 0x4, offset = 0x4, fixed_abs, tag = 'smem constant byte address 0x4 - core index']
  #allocation1 [shape = 'u32[72,128]{1,0:T(1,128)}', space=vmem, size = 0x9000, scoped, tag = 'internal scratch']
  %s0 = inlined_call_operand.hbm [shape: f32[8,16], index: 0, kind: input, shape index: {}]
  %s1 = inlined_call_operand.hbm [shape: f32[8,24], index: 1, kind: input, shape index: {}]
  %s2 = inlined_call_operand.hbm [shape: f32[8,32], index: 2, kind: input, shape index: {}]
  %s3 = inlined_call_operand.hbm [shape: f32[16,16], index: 3, kind: input, shape index: {}]
  %s4 = inlined_call_operand.hbm [shape: f32[1,16], index: 4, kind: input, shape index: {}]
  %s5 = inlined_call_operand.hbm [shape: f32[16,32], index: 5, kind: input, shape index: {}]
  %s6 = inlined_call_operand.hbm [shape: f32[1,32], index: 6, kind: input, shape index: {}]
  %s7 = inlined_call_operand.hbm [shape: f32[1,32], index: 7, kind: input, shape index: {}]
  %s8 = inlined_call_operand.vmem [shape: f32[32,4], index: 8, kind: input, shape index: {}]
  %s9 = inlined_call_operand.vmem [shape: f32[24,24], index: 9, kind: input, shape index: {}]
  %s10 = inlined_call_operand.hbm [shape: f32[1,24], index: 10, kind: input, shape index: {}]
  %s11 = inlined_call_operand.vmem [shape: f32[24,32], index: 11, kind: input, shape index: {}]
  %s12 = inlined_call_operand.hbm [shape: f32[1,32], index: 12, kind: input, shape index: {}]
  %s13 = inlined_call_operand.hbm [shape: f32[1,32], index: 13, kind: input, shape index: {}]
  %s14 = inlined_call_operand.vmem [shape: f32[32,4], index: 14, kind: input, shape index: {}]
  %s15 = inlined_call_operand.vmem [shape: f32[32,32], index: 15, kind: input, shape index: {}]
  %s16 = inlined_call_operand.vmem [shape: f32[1,32], index: 16, kind: input, shape index: {}]
  %s17 = inlined_call_operand.vmem [shape: f32[32,32], index: 17, kind: input, shape index: {}]
  %s18 = inlined_call_operand.vmem [shape: f32[1,32], index: 18, kind: input, shape index: {}]
  %s19 = inlined_call_operand.vmem [shape: f32[1,32], index: 19, kind: input, shape index: {}]
  %s20 = inlined_call_operand.vmem [shape: f32[32,4], index: 20, kind: input, shape index: {}]
  %s21 = inlined_call_operand.vmem [shape: f32[1,3], index: 21, kind: input, shape index: {}]
  %s22 = inlined_call_operand.vmem [shape: f32[1,4], index: 22, kind: input, shape index: {}]
  %s23 = inlined_call_operand.vmem [shape: f32[8,4], index: 23, kind: output, shape index: {}]
  %s24 = sld [smem:[#allocation0]]
  $region146: #{tpu_custom_call.1} parent=0
    _
  %s26 = ssub.s32 1, %s24
  %s27 = scalar_select 0, %s26, %s24
  $region1: #{tpu_custom_call.1} parent=0
    #allocation2 [shape = 'u8[4096]{0}', space=vmem, size = 0x1000, scoped, tag = 'input window, operand 0, single buffered']
    #allocation3 [shape = 's32[1]{0}', space=sflag, size = 0x4, scoped, tag = 'scoped memory for tpu_custom_call.1']
    #allocation4 [shape = 'u8[4096]{0}', space=vmem, size = 0x1000, scoped, tag = 'input window, operand 1, single buffered']
    #allocation5 [shape = 's32[1]{0}', space=sflag, size = 0x4, scoped, tag = 'scoped memory for tpu_custom_call.1']
    #allocation6 [shape = 'u8[4096]{0}', space=vmem, size = 0x1000, scoped, tag = 'input window, operand 2, single buffered']
    #allocation7 [shape = 'u8[8192]{0}', space=vmem, size = 0x2000, scoped, tag = 'input window, operand 3, single buffered']
    #allocation8 [shape = 's32[1]{0}', space=sflag, size = 0x4, scoped, tag = 'scoped memory for tpu_custom_call.1']
    #allocation9 [shape = 'u8[512]{0}', space=vmem, size = 0x400, scoped, tag = 'input window, operand 4, single buffered']
    #allocation10 [shape = 'u8[8192]{0}', space=vmem, size = 0x2000, scoped, tag = 'input window, operand 5, single buffered']
    #allocation11 [shape = 's32[1]{0}', space=sflag, size = 0x4, scoped, tag = 'scoped memory for tpu_custom_call.1']
    #allocation12 [shape = 'u8[512]{0}', space=vmem, size = 0x400, scoped, tag = 'input window, operand 6, single buffered']
    #allocation13 [shape = 'u8[512]{0}', space=vmem, size = 0x400, scoped, tag = 'input window, operand 7, single buffered']
    #allocation14 [shape = 's32[1]{0}', space=sflag, size = 0x4, scoped, tag = 'scoped memory for tpu_custom_call.1']
    #allocation15 [shape = 'u8[512]{0}', space=vmem, size = 0x400, scoped, tag = 'input window, operand 10, single buffered']
    #allocation16 [shape = 'u8[512]{0}', space=vmem, size = 0x400, scoped, tag = 'input window, operand 12, single buffered']
    #allocation17 [shape = 's32[1]{0}', space=sflag, size = 0x4, scoped, tag = 'scoped memory for tpu_custom_call.1']
    #allocation18 [shape = 'u8[512]{0}', space=vmem, size = 0x400, scoped, tag = 'input window, operand 13, single buffered']
    %28 = vsyncpa [#allocation3], 0
    %29 = vsyncpa [#allocation5], 0
    %30 = vsyncpa [#allocation8], 0
    %31 = vsyncpa [#allocation11], 0
    %32 = vsyncpa [#allocation14], 0
    %33 = vsyncpa [#allocation17], 0
    // Predicated region
    $region2: #{tpu_custom_call.1} parent=1 // pred_check
      _
    $region3: #{tpu_custom_call.1} parent=1 // pred_check_branch
      %35 = sbr.rel (0) target = $region5
    $region4: #{tpu_custom_call.1} parent=1 // pred_region
      %37 = vsyncadd [#allocation3], 0
      %s39 = sshll.u32 %s0, 4
      %s40 = int_to_ptr.hbm [resolvable:$true] %s39
      %s41 = sshll.u32 [#allocation2], 4
      %s42 = int_to_ptr.vmem [resolvable:$true] %s41
      %44 = dma.hbm_to_vmem [thread:$0]  %s40, 128, %s42, [#allocation3]
    $region5: #{tpu_custom_call.1} parent=1 // pred_fallthru
      _
    // Predicated region
    $region6: #{tpu_custom_call.1} parent=1 // pred_check
      _
    $region7: #{tpu_custom_call.1} parent=1 // pred_check_branch
      %46 = sbr.rel (0) target = $region9
    $region8: #{tpu_custom_call.1} parent=1 // pred_region
      %48 = vsyncadd [#allocation5], 0
      %s50 = sshll.u32 %s1, 4
      %s51 = int_to_ptr.hbm [resolvable:$true] %s50
      %s52 = sshll.u32 [#allocation4], 4
      %s53 = int_to_ptr.vmem [resolvable:$true] %s52
      %55 = dma.hbm_to_vmem [thread:$0]  %s51, 128, %s53, [#allocation5]
    $region9: #{tpu_custom_call.1} parent=1 // pred_fallthru
      _
    // Predicated region
    $region10: #{tpu_custom_call.1} parent=1 // pred_check
      _
    $region11: #{tpu_custom_call.1} parent=1 // pred_check_branch
      %57 = sbr.rel (0) target = $region13
    $region12: #{tpu_custom_call.1} parent=1 // pred_region
      %59 = vsyncadd [#allocation5], 0
      %s61 = sshll.u32 %s2, 4
      %s62 = int_to_ptr.hbm [resolvable:$true] %s61
      %s63 = sshll.u32 [#allocation6], 4
      %s64 = int_to_ptr.vmem [resolvable:$true] %s63
      %66 = dma.hbm_to_vmem [thread:$0]  %s62, 128, %s64, [#allocation5]
    $region13: #{tpu_custom_call.1} parent=1 // pred_fallthru
      _
    // Predicated region
    $region14: #{tpu_custom_call.1} parent=1 // pred_check
      _
    $region15: #{tpu_custom_call.1} parent=1 // pred_check_branch
      %68 = sbr.rel (0) target = $region17
    $region16: #{tpu_custom_call.1} parent=1 // pred_region
      %70 = vsyncadd [#allocation8], 0
      %s71 = sshll.u32 %s3, 4
      %s72 = int_to_ptr.hbm [resolvable:$true] %s71
      %s73 = sshll.u32 [#allocation7], 4
      %s74 = int_to_ptr.vmem [resolvable:$true] %s73
      %79 = dma.hbm_to_vmem [thread:$0]  %s72, 256, %s74, [#allocation8], 128, 128, 8
    $region17: #{tpu_custom_call.1} parent=1 // pred_fallthru
      _
    // Predicated region
    $region18: #{tpu_custom_call.1} parent=1 // pred_check
      _
    $region19: #{tpu_custom_call.1} parent=1 // pred_check_branch
      %81 = sbr.rel (0) target = $region21
    $region20: #{tpu_custom_call.1} parent=1 // pred_region
      %83 = vsyncadd [#allocation8], 0
      %s85 = sshll.u32 %s4, 4
      %s86 = int_to_ptr.hbm [resolvable:$true] %s85
      %s87 = sshll.u32 [#allocation9], 4
      %s88 = int_to_ptr.vmem [resolvable:$true] %s87
      %90 = dma.hbm_to_vmem [thread:$0]  %s86, 16, %s88, [#allocation8]
    $region21: #{tpu_custom_call.1} parent=1 // pred_fallthru
      _
    // Predicated region
    $region22: #{tpu_custom_call.1} parent=1 // pred_check
      _
    $region23: #{tpu_custom_call.1} parent=1 // pred_check_branch
      %92 = sbr.rel (0) target = $region25
    $region24: #{tpu_custom_call.1} parent=1 // pred_region
      %94 = vsyncadd [#allocation11], 0
      %s95 = sshll.u32 %s5, 4
      %s96 = int_to_ptr.hbm [resolvable:$true] %s95
      %s97 = sshll.u32 [#allocation10], 4
      %s98 = int_to_ptr.vmem [resolvable:$true] %s97
      %103 = dma.hbm_to_vmem [thread:$0]  %s96, 256, %s98, [#allocation11], 128, 128, 8
    $region25: #{tpu_custom_call.1} parent=1 // pred_fallthru
      _
    // Predicated region
    $region26: #{tpu_custom_call.1} parent=1 // pred_check
      _
    $region27: #{tpu_custom_call.1} parent=1 // pred_check_branch
      %105 = sbr.rel (0) target = $region29
    $region28: #{tpu_custom_call.1} parent=1 // pred_region
      %107 = vsyncadd [#allocation11], 0
      %s109 = sshll.u32 %s6, 4
      %s110 = int_to_ptr.hbm [resolvable:$true] %s109
      %s111 = sshll.u32 [#allocation12], 4
      %s112 = int_to_ptr.vmem [resolvable:$true] %s111
      %114 = dma.hbm_to_vmem [thread:$0]  %s110, 16, %s112, [#allocation11]
    $region29: #{tpu_custom_call.1} parent=1 // pred_fallthru
      _
    // Predicated region
    $region30: #{tpu_custom_call.1} parent=1 // pred_check
      _
    $region31: #{tpu_custom_call.1} parent=1 // pred_check_branch
      %116 = sbr.rel (0) target = $region33
    $region32: #{tpu_custom_call.1} parent=1 // pred_region
      %118 = vsyncadd [#allocation14], 0
      %s120 = sshll.u32 %s7, 4
      %s121 = int_to_ptr.hbm [resolvable:$true] %s120
      %s122 = sshll.u32 [#allocation13], 4
      %s123 = int_to_ptr.vmem [resolvable:$true] %s122
      %125 = dma.hbm_to_vmem [thread:$0]  %s121, 16, %s123, [#allocation14]
    $region33: #{tpu_custom_call.1} parent=1 // pred_fallthru
      _
    // Predicated region
    $region34: #{tpu_custom_call.1} parent=1 // pred_check
      _
    $region35: #{tpu_custom_call.1} parent=1 // pred_check_branch
      %127 = sbr.rel (0) target = $region37
    $region36: #{tpu_custom_call.1} parent=1 // pred_region
      _
    $region37: #{tpu_custom_call.1} parent=1 // pred_fallthru
      _
    // Predicated region
    $region38: #{tpu_custom_call.1} parent=1 // pred_check
      _
    $region39: #{tpu_custom_call.1} parent=1 // pred_check_branch
      %129 = sbr.rel (0) target = $region41
    $region40: #{tpu_custom_call.1} parent=1 // pred_region
      _
    $region41: #{tpu_custom_call.1} parent=1 // pred_fallthru
      _
    // Predicated region
    $region42: #{tpu_custom_call.1} parent=1 // pred_check
      _
    $region43: #{tpu_custom_call.1} parent=1 // pred_check_branch
      %131 = sbr.rel (0) target = $region45
    $region44: #{tpu_custom_call.1} parent=1 // pred_region
      %133 = vsyncadd [#allocation14], 0
      %s135 = sshll.u32 %s10, 4
      %s136 = int_to_ptr.hbm [resolvable:$true] %s135
      %s137 = sshll.u32 [#allocation15], 4
      %s138 = int_to_ptr.vmem [resolvable:$true] %s137
      %140 = dma.hbm_to_vmem [thread:$0]  %s136, 16, %s138, [#allocation14]
    $region45: #{tpu_custom_call.1} parent=1 // pred_fallthru
      _
    // Predicated region
    $region46: #{tpu_custom_call.1} parent=1 // pred_check
      _
    $region47: #{tpu_custom_call.1} parent=1 // pred_check_branch
      %142 = sbr.rel (0) target = $region49
    $region48: #{tpu_custom_call.1} parent=1 // pred_region
      _
    $region49: #{tpu_custom_call.1} parent=1 // pred_fallthru
      _
    // Predicated region
    $region50: #{tpu_custom_call.1} parent=1 // pred_check
      _
    $region51: #{tpu_custom_call.1} parent=1 // pred_check_branch
      %144 = sbr.rel (0) target = $region53
    $region52: #{tpu_custom_call.1} parent=1 // pred_region
      %146 = vsyncadd [#allocation17], 0
      %s148 = sshll.u32 %s12, 4
      %s149 = int_to_ptr.hbm [resolvable:$true] %s148
      %s150 = sshll.u32 [#allocation16], 4
      %s151 = int_to_ptr.vmem [resolvable:$true] %s150
      %153 = dma.hbm_to_vmem [thread:$0]  %s149, 16, %s151, [#allocation17]
    $region53: #{tpu_custom_call.1} parent=1 // pred_fallthru
      _
    // Predicated region
    $region54: #{tpu_custom_call.1} parent=1 // pred_check
      _
    $region55: #{tpu_custom_call.1} parent=1 // pred_check_branch
      %155 = sbr.rel (0) target = $region57
    $region56: #{tpu_custom_call.1} parent=1 // pred_region
      %157 = vsyncadd [#allocation17], 0
      %s159 = sshll.u32 %s13, 4
      %s160 = int_to_ptr.hbm [resolvable:$true] %s159
      %s161 = sshll.u32 [#allocation18], 4
      %s162 = int_to_ptr.vmem [resolvable:$true] %s161
      %164 = dma.hbm_to_vmem [thread:$0]  %s160, 16, %s162, [#allocation17]
    $region57: #{tpu_custom_call.1} parent=1 // pred_fallthru
      _
    // Predicated region
    $region58: #{tpu_custom_call.1} parent=1 // pred_check
      _
    $region59: #{tpu_custom_call.1} parent=1 // pred_check_branch
      %166 = sbr.rel (0) target = $region61
    $region60: #{tpu_custom_call.1} parent=1 // pred_region
      _
    $region61: #{tpu_custom_call.1} parent=1 // pred_fallthru
      _
    // Predicated region
    $region62: #{tpu_custom_call.1} parent=1 // pred_check
      _
    $region63: #{tpu_custom_call.1} parent=1 // pred_check_branch
      %168 = sbr.rel (0) target = $region65
    $region64: #{tpu_custom_call.1} parent=1 // pred_region
      _
    $region65: #{tpu_custom_call.1} parent=1 // pred_fallthru
      _
    // Predicated region
    $region66: #{tpu_custom_call.1} parent=1 // pred_check
      _
    $region67: #{tpu_custom_call.1} parent=1 // pred_check_branch
      %170 = sbr.rel (0) target = $region69
    $region68: #{tpu_custom_call.1} parent=1 // pred_region
      _
    $region69: #{tpu_custom_call.1} parent=1 // pred_fallthru
      _
    // Predicated region
    $region70: #{tpu_custom_call.1} parent=1 // pred_check
      _
    $region71: #{tpu_custom_call.1} parent=1 // pred_check_branch
      %172 = sbr.rel (0) target = $region73
    $region72: #{tpu_custom_call.1} parent=1 // pred_region
      _
    $region73: #{tpu_custom_call.1} parent=1 // pred_fallthru
      _
    // Predicated region
    $region74: #{tpu_custom_call.1} parent=1 // pred_check
      _
    $region75: #{tpu_custom_call.1} parent=1 // pred_check_branch
      %174 = sbr.rel (0) target = $region77
    $region76: #{tpu_custom_call.1} parent=1 // pred_region
      _
    $region77: #{tpu_custom_call.1} parent=1 // pred_fallthru
      _
    // Predicated region
    $region78: #{tpu_custom_call.1} parent=1 // pred_check
      _
    $region79: #{tpu_custom_call.1} parent=1 // pred_check_branch
      %176 = sbr.rel (0) target = $region81
    $region80: #{tpu_custom_call.1} parent=1 // pred_region
      _
    $region81: #{tpu_custom_call.1} parent=1 // pred_fallthru
      _
    // Predicated region
    $region82: #{tpu_custom_call.1} parent=1 // pred_check
      _
    $region83: #{tpu_custom_call.1} parent=1 // pred_check_branch
      %178 = sbr.rel (0) target = $region85
    $region84: #{tpu_custom_call.1} parent=1 // pred_region
      _
    $region85: #{tpu_custom_call.1} parent=1 // pred_fallthru
      _
    // Predicated region
    $region86: #{tpu_custom_call.1} parent=1 // pred_check
      _
    $region87: #{tpu_custom_call.1} parent=1 // pred_check_branch
      %180 = sbr.rel (0) target = $region89
    $region88: #{tpu_custom_call.1} parent=1 // pred_region
      _
    $region89: #{tpu_custom_call.1} parent=1 // pred_fallthru
      _
    // Predicated region
    $region90: #{tpu_custom_call.1} parent=1 // pred_check
      _
    $region91: #{tpu_custom_call.1} parent=1 // pred_check_branch
      %182 = sbr.rel (0) target = $region93
    $region92: #{tpu_custom_call.1} parent=1 // pred_region
      _
    $region93: #{tpu_custom_call.1} parent=1 // pred_fallthru
      _
    // Predicated region
    $region94: #{tpu_custom_call.1} parent=1 // pred_check
      _
    $region95: #{tpu_custom_call.1} parent=1 // pred_check_branch
      %184 = sbr.rel (0) target = $region97
    $region96: #{tpu_custom_call.1} parent=1 // pred_region
      %186 = dma.done [#allocation3], 128
    $region97: #{tpu_custom_call.1} parent=1 // pred_fallthru
      _
    // Predicated region
    $region98: #{tpu_custom_call.1} parent=1 // pred_check
      _
    $region99: #{tpu_custom_call.1} parent=1 // pred_check_branch
      %188 = sbr.rel (0) target = $region101
    $region100: #{tpu_custom_call.1} parent=1 // pred_region
      %190 = dma.done [#allocation5], 128
    $region101: #{tpu_custom_call.1} parent=1 // pred_fallthru
      _
    // Predicated region
    $region102: #{tpu_custom_call.1} parent=1 // pred_check
      _
    $region103: #{tpu_custom_call.1} parent=1 // pred_check_branch
      %192 = sbr.rel (0) target = $region105
    $region104: #{tpu_custom_call.1} parent=1 // pred_region
      %194 = dma.done [#allocation5], 128
    $region105: #{tpu_custom_call.1} parent=1 // pred_fallthru
      _
    // Predicated region
    $region106: #{tpu_custom_call.1} parent=1 // pred_check
      _
    $region107: #{tpu_custom_call.1} parent=1 // pred_check_branch
      %196 = sbr.rel (0) target = $region109
    $region108: #{tpu_custom_call.1} parent=1 // pred_region
      %198 = dma.done [#allocation8], 256
    $region109: #{tpu_custom_call.1} parent=1 // pred_fallthru
      _
    // Predicated region
    $region110: #{tpu_custom_call.1} parent=1 // pred_check
      _
    $region111: #{tpu_custom_call.1} parent=1 // pred_check_branch
      %200 = sbr.rel (0) target = $region113
    $region112: #{tpu_custom_call.1} parent=1 // pred_region
      %202 = dma.done [#allocation8], 16
    $region113: #{tpu_custom_call.1} parent=1 // pred_fallthru
      _
    // Predicated region
    $region114: #{tpu_custom_call.1} parent=1 // pred_check
      _
    $region115: #{tpu_custom_call.1} parent=1 // pred_check_branch
      %204 = sbr.rel (0) target = $region117
    $region116: #{tpu_custom_call.1} parent=1 // pred_region
      %206 = dma.done [#allocation11], 256
    $region117: #{tpu_custom_call.1} parent=1 // pred_fallthru
      _
    // Predicated region
    $region118: #{tpu_custom_call.1} parent=1 // pred_check
      _
    $region119: #{tpu_custom_call.1} parent=1 // pred_check_branch
      %208 = sbr.rel (0) target = $region121
    $region120: #{tpu_custom_call.1} parent=1 // pred_region
      %210 = dma.done [#allocation11], 16
    $region121: #{tpu_custom_call.1} parent=1 // pred_fallthru
      _
    // Predicated region
    $region122: #{tpu_custom_call.1} parent=1 // pred_check
      _
    $region123: #{tpu_custom_call.1} parent=1 // pred_check_branch
      %212 = sbr.rel (0) target = $region125
    $region124: #{tpu_custom_call.1} parent=1 // pred_region
      %214 = dma.done [#allocation14], 16
    $region125: #{tpu_custom_call.1} parent=1 // pred_fallthru
      _
    // Predicated region
    $region126: #{tpu_custom_call.1} parent=1 // pred_check
      _
    $region127: #{tpu_custom_call.1} parent=1 // pred_check_branch
      %216 = sbr.rel (0) target = $region129
    $region128: #{tpu_custom_call.1} parent=1 // pred_region
      %218 = dma.done [#allocation14], 16
    $region129: #{tpu_custom_call.1} parent=1 // pred_fallthru
      _
    // Predicated region
    $region130: #{tpu_custom_call.1} parent=1 // pred_check
      _
    $region131: #{tpu_custom_call.1} parent=1 // pred_check_branch
      %220 = sbr.rel (0) target = $region133
    $region132: #{tpu_custom_call.1} parent=1 // pred_region
      %222 = dma.done [#allocation17], 16
    $region133: #{tpu_custom_call.1} parent=1 // pred_fallthru
      _
    // Predicated region
    $region134: #{tpu_custom_call.1} parent=1 // pred_check
      _
    $region135: #{tpu_custom_call.1} parent=1 // pred_check_branch
      %224 = sbr.rel (0) target = $region137
    $region136: #{tpu_custom_call.1} parent=1 // pred_region
      %226 = dma.done [#allocation17], 16
    $region137: #{tpu_custom_call.1} parent=1 // pred_fallthru
      _
    %v227 = vld [vmem:[#allocation2] sm:$0xff]
    %v228 = vld [vmem:[#allocation7] sm:$0xff]
    %v229 = vld [vmem:[#allocation7 + $0x8] sm:$0xff]
    %v230 = vld [vmem:[#allocation9] sm:$0x1]
    %v232 = vperm.slane %v230, 0
    %vm234 = vcmask 130048
    %v236 = vsel %vm234, %v227, 0
    %238 = vmatpush.msra.mxu0 0.0
    %239 = vmatpush.msra.mxu0 0.0
    %240 = vmatpush.msra.mxu0 0.0
    %241 = vmatpush.msra.mxu0 0.0
    %242 = vmatpush.msra.mxu0 0.0
    %243 = vmatpush.msra.mxu0 0.0
    %244 = vmatpush.msra.mxu0 0.0
    %245 = vmatpush.msra.mxu0 0.0
    %246 = vmatpush.msra.mxu0 0.0
    %247 = vmatpush.msra.mxu0 0.0
    %248 = vmatpush.msra.mxu0 0.0
    %249 = vmatpush.msra.mxu0 0.0
    %250 = vmatpush.msra.mxu0 0.0
    %251 = vmatpush.msra.mxu0 0.0
    %252 = vmatpush.msra.mxu0 %v229
    %253 = vmatpush.msra.mxu0 %v228
    %254 = vmatmul.f32.gmra.mxu0 %v236
    %v255 = vpop.f32.mrf.mxu0
    %v256 = vadd.f32 %v232, %v255
    %257 = vdwg.mxu0
    %v258 = vsub.f32 0.0, %v256
    %v259 = vmul.f32 %v258, 1.442695
    %v260 = vpow.pop %v259
    %v261 = vadd.f32 %v260, 1.0
    %v262 = vrcp.pop %v261
    %v263 = vmul.f32 %v261, %v262
    %v264 = vsub.f32 1.0, %v263
    %v265 = vmul.f32 %v262, %v264
    %v266 = vadd.f32 %v262, %v265
    %vm267 = vweird.f32 %v261
    %vm268 = vweird.f32 %v262
    %vm269 = vmor %vm267, %vm268
    %v270 = vsel %vm269, %v262, %v266
    %v271 = vand.u32 2147483647, %v261
    %vm272 = vcmp.eq.f32.partialorder %v271, 8.507059e+37
    %v273 = vand.u32 %v261, 2147483648
    %v274 = vor.u32 1.1754944e-38, %v273
    %v275 = vsel %vm272, %v274, %v270
    %v276 = vmul.f32 %v227, %v275
    %v277 = vld [vmem:[#allocation10] sm:$0xff]
    %v278 = vld [vmem:[#allocation10 + $0x8] sm:$0xff]
    %v279 = vld [vmem:[#allocation12] sm:$0x1]
    %v281 = vperm.slane %v279, 0
    %v284 = vsel %vm234, %v276, 0
    %286 = vmatpush.msra.mxu0 0.0
    %287 = vmatpush.msra.mxu0 0.0
    %288 = vmatpush.msra.mxu0 0.0
    %289 = vmatpush.msra.mxu0 0.0
    %290 = vmatpush.msra.mxu0 0.0
    %291 = vmatpush.msra.mxu0 0.0
    %292 = vmatpush.msra.mxu0 0.0
    %293 = vmatpush.msra.mxu0 0.0
    %294 = vmatpush.msra.mxu0 0.0
    %295 = vmatpush.msra.mxu0 0.0
    %296 = vmatpush.msra.mxu0 0.0
    %297 = vmatpush.msra.mxu0 0.0
    %298 = vmatpush.msra.mxu0 0.0
    %299 = vmatpush.msra.mxu0 0.0
    %300 = vmatpush.msra.mxu0 %v278
    %301 = vmatpush.msra.mxu0 %v277
    %302 = vmatmul.f32.gmra.mxu0 %v284
    %v303 = vpop.f32.mrf.mxu0
    %v304 = vadd.f32 %v281, %v303
    %305 = vdwg.mxu0
    %v306 = vmax.f32 %v304, 0.0
    %v307 = vld [vmem:[#allocation13] sm:$0x1]
    %v309 = vperm.slane %v307, 0
    %v311 = vmul.f32 %v306, %v309
    %vm312 = vcmask 261120
    %v313 = vsel %vm312, %v311, 0.0
    %314 = vadd.xlane.f32.xlu0 %v313
    %v315 = vpop.xlane.xlu0 %314
    %v316 = vld [vmem:[%s21] sm:$0x1]
    %v318 = vperm.slane %v316, 0
    %v320 = vadd.f32 %v315, %v318
    %322 = vset.pattern.permute.xlu0 0
    %323 = vperm.xlu0 %322, %v320
    %v324 = vpop.permute.xlu0 %323
    %v326 = vmul.f32 %v306, %v324
    %v327 = vld [vmem:[%s8] sm:$0xff]
    %v328 = vld [vmem:[%s8 + $0x8] sm:$0xff]
    %v329 = vld [vmem:[%s8 + $0x10] sm:$0xff]
    %v330 = vld [vmem:[%s8 + $0x18] sm:$0xff]
    %v331 = vld [vmem:[#allocation4] sm:$0xff]
    %v332 = vld [vmem:[%s9] sm:$0xff]
    %v333 = vld [vmem:[%s9 + $0x8] sm:$0xff]
    %v334 = vld [vmem:[%s9 + $0x10] sm:$0xff]
    %v335 = vld [vmem:[#allocation15] sm:$0x1]
    %v337 = vperm.slane %v335, 0
    %vm339 = vcmask 195584
    %v341 = vsel %vm339, %v331, 0
    %343 = vmatpush.msra.mxu0 0.0
    %344 = vmatpush.msra.mxu0 0.0
    %345 = vmatpush.msra.mxu0 0.0
    %346 = vmatpush.msra.mxu0 0.0
    %347 = vmatpush.msra.mxu0 0.0
    %348 = vmatpush.msra.mxu0 0.0
    %349 = vmatpush.msra.mxu0 0.0
    %350 = vmatpush.msra.mxu0 0.0
    %351 = vmatpush.msra.mxu0 0.0
    %352 = vmatpush.msra.mxu0 0.0
    %353 = vmatpush.msra.mxu0 0.0
    %354 = vmatpush.msra.mxu0 0.0
    %355 = vmatpush.msra.mxu0 0.0
    %356 = vmatpush.msra.mxu0 %v334
    %357 = vmatpush.msra.mxu0 %v333
    %358 = vmatpush.msra.mxu0 %v332
    %359 = vmatmul.f32.gmra.mxu0 %v341
    %v360 = vpop.f32.mrf.mxu0
    %v361 = vadd.f32 %v337, %v360
    %362 = vdwg.mxu0
    %v363 = vsub.f32 0.0, %v361
    %v364 = vmul.f32 %v363, 1.442695
    %v365 = vpow.pop %v364
    %v366 = vadd.f32 %v365, 1.0
    %v367 = vrcp.pop %v366
    %v368 = vmul.f32 %v366, %v367
    %v369 = vsub.f32 1.0, %v368
    %v370 = vmul.f32 %v367, %v369
    %v371 = vadd.f32 %v367, %v370
    %vm372 = vweird.f32 %v366
    %vm373 = vweird.f32 %v367
    %vm374 = vmor %vm372, %vm373
    %v375 = vsel %vm374, %v367, %v371
    %v376 = vand.u32 2147483647, %v366
    %vm377 = vcmp.eq.f32.partialorder %v376, 8.507059e+37
    %v378 = vand.u32 %v366, 2147483648
    %v379 = vor.u32 1.1754944e-38, %v378
    %v380 = vsel %vm377, %v379, %v375
    %v381 = vmul.f32 %v331, %v380
    %v382 = vld [vmem:[%s11] sm:$0xff]
    %v383 = vld [vmem:[%s11 + $0x8] sm:$0xff]
    %v384 = vld [vmem:[%s11 + $0x10] sm:$0xff]
    %v385 = vld [vmem:[#allocation16] sm:$0x1]
    %v387 = vperm.slane %v385, 0
    %v390 = vsel %vm339, %v381, 0
    %392 = vmatpush.msra.mxu0 0.0
    %393 = vmatpush.msra.mxu0 0.0
    %394 = vmatpush.msra.mxu0 0.0
    %395 = vmatpush.msra.mxu0 0.0
    %396 = vmatpush.msra.mxu0 0.0
    %397 = vmatpush.msra.mxu0 0.0
    %398 = vmatpush.msra.mxu0 0.0
    %399 = vmatpush.msra.mxu0 0.0
    %400 = vmatpush.msra.mxu0 0.0
    %401 = vmatpush.msra.mxu0 0.0
    %402 = vmatpush.msra.mxu0 0.0
    %403 = vmatpush.msra.mxu0 0.0
    %404 = vmatpush.msra.mxu0 0.0
    %405 = vmatpush.msra.mxu0 %v384
    %406 = vmatpush.msra.mxu0 %v383
    %407 = vmatpush.msra.mxu0 %v382
    %408 = vmatmul.f32.gmra.mxu0 %v390
    %v409 = vpop.f32.mrf.mxu0
    %v410 = vadd.f32 %v387, %v409
    %411 = vdwg.mxu0
    %v412 = vmax.f32 %v410, 0.0
    %v413 = vld [vmem:[#allocation18] sm:$0x1]
    %v415 = vperm.slane %v413, 0
    %v417 = vmul.f32 %v412, %v415
    %v418 = vsel %vm312, %v417, 0.0
    %419 = vadd.xlane.f32.xlu0 %v418
    %v420 = vpop.xlane.xlu0 %419
    %v421 = vadd.f32 %v420, %v318
    %423 = vset.pattern.permute.xlu0 1
    %424 = vperm.xlu0 %423, %v421
    %v425 = vpop.permute.xlu0 %424
    %v427 = vmul.f32 %v412, %v425
    %v428 = vld [vmem:[%s14] sm:$0xff]
    %v429 = vld [vmem:[%s14 + $0x8] sm:$0xff]
    %v430 = vld [vmem:[%s14 + $0x10] sm:$0xff]
    %v431 = vld [vmem:[%s14 + $0x18] sm:$0xff]
    %v433 = vsel %vm312, %v427, 0
    %435 = vmatpush.msra.mxu0 0.0
    %436 = vmatpush.msra.mxu0 0.0
    %437 = vmatpush.msra.mxu0 0.0
    %438 = vmatpush.msra.mxu0 0.0
    %439 = vmatpush.msra.mxu0 0.0
    %440 = vmatpush.msra.mxu0 0.0
    %441 = vmatpush.msra.mxu0 0.0
    %442 = vmatpush.msra.mxu0 0.0
    %443 = vmatpush.msra.mxu0 0.0
    %444 = vmatpush.msra.mxu0 0.0
    %445 = vmatpush.msra.mxu0 0.0
    %446 = vmatpush.msra.mxu0 0.0
    %447 = vmatpush.msra.mxu0 %v431
    %448 = vmatpush.msra.mxu0 %v430
    %449 = vmatpush.msra.mxu0 %v429
    %450 = vmatpush.msra.mxu0 %v428
    %451 = vmatmul.f32.gmra.mxu0 %v433
    %v452 = vpop.f32.mrf.mxu0
    %v453 = vadd.f32 0.0, %v452
    %454 = vdwg.mxu0
    %v456 = vsel %vm312, %v326, 0
    %458 = vmatpush.msra.mxu0 0.0
    %459 = vmatpush.msra.mxu0 0.0
    %460 = vmatpush.msra.mxu0 0.0
    %461 = vmatpush.msra.mxu0 0.0
    %462 = vmatpush.msra.mxu0 0.0
    %463 = vmatpush.msra.mxu0 0.0
    %464 = vmatpush.msra.mxu0 0.0
    %465 = vmatpush.msra.mxu0 0.0
    %466 = vmatpush.msra.mxu0 0.0
    %467 = vmatpush.msra.mxu0 0.0
    %468 = vmatpush.msra.mxu0 0.0
    %469 = vmatpush.msra.mxu0 0.0
    %470 = vmatpush.msra.mxu0 %v330
    %471 = vmatpush.msra.mxu0 %v329
    %472 = vmatpush.msra.mxu0 %v328
    %473 = vmatpush.msra.mxu0 %v327
    %474 = vmatmul.f32.gmra.mxu0 %v456
    %v475 = vpop.f32.mrf.mxu0
    %v476 = vadd.f32 %v453, %v475
    %477 = vdwg.mxu0
    %v478 = vld [vmem:[#allocation6] sm:$0xff]
    %v479 = vld [vmem:[%s15] sm:$0xff]
    %v480 = vld [vmem:[%s15 + $0x8] sm:$0xff]
    %v481 = vld [vmem:[%s15 + $0x10] sm:$0xff]
    %v482 = vld [vmem:[%s15 + $0x18] sm:$0xff]
    %v483 = vld [vmem:[%s16] sm:$0x1]
    %v485 = vperm.slane %v483, 0
    %v488 = vsel %vm312, %v478, 0
    %490 = vmatpush.msra.mxu0 0.0
    %491 = vmatpush.msra.mxu0 0.0
    %492 = vmatpush.msra.mxu0 0.0
    %493 = vmatpush.msra.mxu0 0.0
    %494 = vmatpush.msra.mxu0 0.0
    %495 = vmatpush.msra.mxu0 0.0
    %496 = vmatpush.msra.mxu0 0.0
    %497 = vmatpush.msra.mxu0 0.0
    %498 = vmatpush.msra.mxu0 0.0
    %499 = vmatpush.msra.mxu0 0.0
    %500 = vmatpush.msra.mxu0 0.0
    %501 = vmatpush.msra.mxu0 0.0
    %502 = vmatpush.msra.mxu0 %v482
    %503 = vmatpush.msra.mxu0 %v481
    %504 = vmatpush.msra.mxu0 %v480
    %505 = vmatpush.msra.mxu0 %v479
    %506 = vmatmul.f32.gmra.mxu0 %v488
    %v507 = vpop.f32.mrf.mxu0
    %v508 = vadd.f32 %v485, %v507
    %509 = vdwg.mxu0
    %v510 = vsub.f32 0.0, %v508
    %v511 = vmul.f32 %v510, 1.442695
    %v512 = vpow.pop %v511
    %v513 = vadd.f32 %v512, 1.0
    %v514 = vrcp.pop %v513
    %v515 = vmul.f32 %v513, %v514
    %v516 = vsub.f32 1.0, %v515
    %v517 = vmul.f32 %v514, %v516
    %v518 = vadd.f32 %v514, %v517
    %vm519 = vweird.f32 %v513
    %vm520 = vweird.f32 %v514
    %vm521 = vmor %vm519, %vm520
    %v522 = vsel %vm521, %v514, %v518
    %v523 = vand.u32 2147483647, %v513
    %vm524 = vcmp.eq.f32.partialorder %v523, 8.507059e+37
    %v525 = vand.u32 %v513, 2147483648
    %v526 = vor.u32 1.1754944e-38, %v525
    %v527 = vsel %vm524, %v526, %v522
    %v528 = vmul.f32 %v478, %v527
    %v529 = vld [vmem:[%s17] sm:$0xff]
    %v530 = vld [vmem:[%s17 + $0x8] sm:$0xff]
    %v531 = vld [vmem:[%s17 + $0x10] sm:$0xff]
    %v532 = vld [vmem:[%s17 + $0x18] sm:$0xff]
    %v533 = vld [vmem:[%s18] sm:$0x1]
    %v535 = vperm.slane %v533, 0
    %v538 = vsel %vm312, %v528, 0
    %540 = vmatpush.msra.mxu0 0.0
    %541 = vmatpush.msra.mxu0 0.0
    %542 = vmatpush.msra.mxu0 0.0
    %543 = vmatpush.msra.mxu0 0.0
    %544 = vmatpush.msra.mxu0 0.0
    %545 = vmatpush.msra.mxu0 0.0
    %546 = vmatpush.msra.mxu0 0.0
    %547 = vmatpush.msra.mxu0 0.0
    %548 = vmatpush.msra.mxu0 0.0
    %549 = vmatpush.msra.mxu0 0.0
    %550 = vmatpush.msra.mxu0 0.0
    %551 = vmatpush.msra.mxu0 0.0
    %552 = vmatpush.msra.mxu0 %v532
    %553 = vmatpush.msra.mxu0 %v531
    %554 = vmatpush.msra.mxu0 %v530
    %555 = vmatpush.msra.mxu0 %v529
    %556 = vmatmul.f32.gmra.mxu0 %v538
    %v557 = vpop.f32.mrf.mxu0
    %v558 = vadd.f32 %v535, %v557
    %559 = vdwg.mxu0
    %v560 = vmax.f32 %v558, 0.0
    %v561 = vld [vmem:[%s19] sm:$0x1]
    %v563 = vperm.slane %v561, 0
    %v565 = vmul.f32 %v560, %v563
    %v566 = vsel %vm312, %v565, 0.0
    %567 = vadd.xlane.f32.xlu0 %v566
    %v568 = vpop.xlane.xlu0 %567
    %v569 = vadd.f32 %v568, %v318
    %571 = vset.pattern.permute.xlu0 2
    %572 = vperm.xlu0 %571, %v569
    %v573 = vpop.permute.xlu0 %572
    %v575 = vmul.f32 %v560, %v573
    %v576 = vld [vmem:[%s20] sm:$0xff]
    %v577 = vld [vmem:[%s20 + $0x8] sm:$0xff]
    %v578 = vld [vmem:[%s20 + $0x10] sm:$0xff]
    %v579 = vld [vmem:[%s20 + $0x18] sm:$0xff]
    %v581 = vsel %vm312, %v575, 0
    %583 = vmatpush.msra.mxu0 0.0
    %584 = vmatpush.msra.mxu0 0.0
    %585 = vmatpush.msra.mxu0 0.0
    %586 = vmatpush.msra.mxu0 0.0
    %587 = vmatpush.msra.mxu0 0.0
    %588 = vmatpush.msra.mxu0 0.0
    %589 = vmatpush.msra.mxu0 0.0
    %590 = vmatpush.msra.mxu0 0.0
    %591 = vmatpush.msra.mxu0 0.0
    %592 = vmatpush.msra.mxu0 0.0
    %593 = vmatpush.msra.mxu0 0.0
    %594 = vmatpush.msra.mxu0 0.0
    %595 = vmatpush.msra.mxu0 %v579
    %596 = vmatpush.msra.mxu0 %v578
    %597 = vmatpush.msra.mxu0 %v577
    %598 = vmatpush.msra.mxu0 %v576
    %599 = vmatmul.f32.gmra.mxu0 %v581
    %v600 = vpop.f32.mrf.mxu0
    %v601 = vadd.f32 0.0, %v600
    %602 = vdwg.mxu0
    %v603 = vadd.f32 %v476, %v601
    %v604 = vld [vmem:[%s22] sm:$0x1]
    %v606 = vperm.slane %v604, 0
    %v608 = vadd.f32 %v603, %v606
    %vm609 = vcmask 31744
    %610 = vst.msk [vmem:[%s23] sm:$0xff] %vm609, %v608
    // Predicated region
    $region138: #{tpu_custom_call.1} parent=1 // pred_check
      _
    $region139: #{tpu_custom_call.1} parent=1 // pred_check_branch
      %612 = sbr.rel (0) target = $region141
    $region140: #{tpu_custom_call.1} parent=1 // pred_region
      _
    $region141: #{tpu_custom_call.1} parent=1 // pred_fallthru
      _
    // Predicated region
    $region142: #{tpu_custom_call.1} parent=1 // pred_check
      _
    $region143: #{tpu_custom_call.1} parent=1 // pred_check_branch
      %614 = sbr.rel (0) target = $region145
    $region144: #{tpu_custom_call.1} parent=1 // pred_region
      _
    $region145: #{tpu_custom_call.1} parent=1 // pred_fallthru
      _
    %615 = vsyncpa [#allocation3], 1
    %616 = vsyncpa [#allocation5], 1
    %617 = vsyncpa [#allocation8], 1
    %618 = vsyncpa [#allocation11], 1
    %619 = vsyncpa [#allocation14], 1
    %620 = vsyncpa [#allocation17], 1

</llo_original>
